<compile_context>
chip_gen: v7x
topology: tpu7x:2x2x1
jax: 0.10.0
libtpu: 0.0.40
codegen_flags: <defaults>
</compile_context>

<pallas_src>
import jax
import jax.numpy as jnp
from jax.experimental import pallas as pl
from jax.experimental.pallas import tpu as pltpu


# ---------------------------------------------------------------------------
# Fused kernel builder
# ---------------------------------------------------------------------------

def _make_fused_kernel(block_has_proj, n_params):
    """Build a kernel for the whole network.

    block_has_proj: tuple[bool] -- True if that residual block has a projection
                    (linear) shortcut, False for identity shortcut.
    n_params:       number of flattened weight/bias arrays passed as inputs
                    (after the activation input).
    """

    def kernel(*refs):
        x_ref = refs[0]
        p_refs = refs[1:1 + n_params]
        o_ref = refs[1 + n_params]

        idx = [0]

        def take():
            r = p_refs[idx[0]][...]
            idx[0] += 1
            return r

        # ---- linear1 + ReLU -------------------------------------------------
        x = x_ref[...].astype(jnp.float32)
        w, b = take(), take()
        h = jnp.dot(x, w, preferred_element_type=jnp.float32) + b
        h = jnp.maximum(h, 0.0)

        # ---- residual blocks --------------------------------------------------
        # Activations stay in vregs between layers (no VMEM round-trip).
        for has_proj in block_has_proj:
            x = h
            w1, b1 = take(), take()
            w2, b2 = take(), take()
            if has_proj:
                ws, bs = take(), take()
                # Shortcut matmul is independent of the linear1->relu->linear2
                # chain; issuing it first lets the MXU overlap the VPU epilogue.
                sc = jnp.dot(x, ws, preferred_element_type=jnp.float32) + bs
            else:
                sc = x
            h1 = jnp.dot(x, w1, preferred_element_type=jnp.float32) + b1
            h1 = jnp.maximum(h1, 0.0)
            out = jnp.dot(h1, w2, preferred_element_type=jnp.float32) + b2
            h = jnp.maximum(out + sc, 0.0)

        # ---- final fc (no activation) ---------------------------------------
        wf, bf = take(), take()
        y = jnp.dot(h, wf, preferred_element_type=jnp.float32) + bf
        o_ref[...] = y.astype(o_ref.dtype)

    return kernel


# ---------------------------------------------------------------------------
# Wrapper: pad to lane-dense shapes, flatten params, single pallas_call
# ---------------------------------------------------------------------------

def _round_up(n, m):
    return ((n + m - 1) // m) * m


def _pad2(a, rows, cols):
    return jnp.pad(a, ((0, rows - a.shape[0]), (0, cols - a.shape[1])))


def feed_forward_resnet_forward(x, params):
    batch, in_f = x.shape
    p_in = _round_up(in_f, 128)

    flat = []          # flattened, padded weight/bias arrays (kernel inputs)
    plan = []          # per-block: has projection shortcut?
    mm_dims = []       # (K, N) of every matmul (padded) for the cost estimate

    # linear1
    w, b = params["linear1_w"], params["linear1_b"]
    cur = _round_up(w.shape[1], 128)
    flat += [_pad2(w, p_in, cur), _pad2(b, 1, cur)]
    mm_dims.append((p_in, cur))

    # residual blocks
    for blk in params["blocks"]:
        w1, b1, w2, b2 = blk["w1"], blk["b1"], blk["w2"], blk["b2"]
        p_out = _round_up(w1.shape[1], 128)
        flat += [_pad2(w1, cur, p_out), _pad2(b1, 1, p_out),
                 _pad2(w2, p_out, p_out), _pad2(b2, 1, p_out)]
        mm_dims += [(cur, p_out), (p_out, p_out)]
        if blk["shortcut"] is not None:
            ws, bs = blk["shortcut"]
            flat += [_pad2(ws, cur, p_out), _pad2(bs, 1, p_out)]
            mm_dims.append((cur, p_out))
            plan.append(True)
        else:
            plan.append(False)
        cur = p_out

    # final fc
    wf, bf = params["fc_w"], params["fc_b"]
    out_f = wf.shape[1]
    p_fc = _round_up(out_f, 128)
    flat += [_pad2(wf, cur, p_fc), _pad2(bf, 1, p_fc)]
    mm_dims.append((cur, p_fc))

    # batch padding / tiling (grid over batch; shards across v7x's 2 TCs)
    batch_pad = _round_up(batch, 8)
    tb = min(batch_pad, 128)
    batch_pad = _round_up(batch_pad, tb)
    x_pad = jnp.pad(x, ((0, batch_pad - batch), (0, p_in - in_f)))

    kernel = _make_fused_kernel(tuple(plan), len(flat))

    itemsize = jnp.dtype(x.dtype).itemsize
    flops = 2 * batch_pad * sum(k * n for k, n in mm_dims)
    bytes_accessed = (x_pad.size * itemsize
                      + sum(int(a.size) * itemsize for a in flat)
                      + batch_pad * p_fc * itemsize)

    out_pad = pl.pallas_call(
        kernel,
        out_shape=jax.ShapeDtypeStruct((batch_pad, p_fc), x.dtype),
        grid=(batch_pad // tb,),
        in_specs=[pl.BlockSpec((tb, p_in), lambda i: (i, 0))]
                 + [pl.BlockSpec(a.shape, lambda i: (0, 0)) for a in flat],
        out_specs=pl.BlockSpec((tb, p_fc), lambda i: (i, 0)),
        compiler_params=pltpu.CompilerParams(
            dimension_semantics=("parallel",)),
        cost_estimate=pl.CostEstimate(flops=flops, transcendentals=0,
                                      bytes_accessed=bytes_accessed),
    )(x_pad, *flat)

    return out_pad[:batch, :out_f]


# ---------------------------------------------------------------------------
# Deterministic parameter construction (shapes from FeedForwardResNet.__init__)
# ---------------------------------------------------------------------------

def _init_linear(key, in_f, out_f):
    kw, kb = jax.random.split(key)
    bound = 1.0 / (in_f ** 0.5)
    w = jax.random.uniform(kw, (in_f, out_f), jnp.float32, -bound, bound)
    b = jax.random.uniform(kb, (1, out_f), jnp.float32, -bound, bound)
    return w, b


def init_params(key, input_size, block_sizes, output_size):
    keys = jax.random.split(key, 2 + 3 * (len(block_sizes) - 1))
    ki = iter(keys)
    params = {}
    params["linear1_w"], params["linear1_b"] = _init_linear(next(ki), input_size,
                                                            block_sizes[0])
    blocks = []
    for i in range(len(block_sizes) - 1):
        in_f, out_f = block_sizes[i], block_sizes[i + 1]
        w1, b1 = _init_linear(next(ki), in_f, out_f)
        w2, b2 = _init_linear(next(ki), out_f, out_f)
        shortcut = None
        if in_f != out_f:
            shortcut = _init_linear(next(ki), in_f, out_f)
        else:
            _ = next(ki)  # keep key consumption deterministic regardless of branch
        blocks.append({"w1": w1, "b1": b1, "w2": w2, "b2": b2, "shortcut": shortcut})
    params["blocks"] = blocks
    params["fc_w"], params["fc_b"] = _init_linear(next(ki), block_sizes[-1],
                                                  output_size)
    return params


# ---------------------------------------------------------------------------
# Pure-JAX reference (for correctness check)
# ---------------------------------------------------------------------------

def reference_forward(x, params):
    def lin(x, w, b):
        return x @ w + b

    x = jax.nn.relu(lin(x, params["linear1_w"], params["linear1_b"]))
    for blk in params["blocks"]:
        res = x
        out = jax.nn.relu(lin(x, blk["w1"], blk["b1"]))
        out = lin(out, blk["w2"], blk["b2"])
        if blk["shortcut"] is None:
            out = out + res
        else:
            ws, bs = blk["shortcut"]
            out = out + lin(res, ws, bs)
        x = jax.nn.relu(out)
    return lin(x, params["fc_w"], params["fc_b"])


# ---------------------------------------------------------------------------

if __name__ == "__main__":
    key = jax.random.PRNGKey(0)
    k_param, k_x = jax.random.split(key)

    batch = 8
    input_size = 16
    block_sizes = [32, 32, 64]   # block 0: identity shortcut, block 1: linear shortcut
    output_size = 8

    params = init_params(k_param, input_size, block_sizes, output_size)
    x = jax.random.normal(k_x, (batch, input_size), jnp.float32)

    fwd = jax.jit(feed_forward_resnet_forward)
    out = fwd(x, params)
    out = jax.block_until_ready(out)

    ref = reference_forward(x, params)
    assert out.shape == (batch, output_size)
    assert jnp.allclose(out, ref, atol=1e-4, rtol=1e-4), "Pallas output mismatch vs reference"

    print("KERNEL_OK")
</pallas_src>

<mosaic_0001>
module attributes {stable_mosaic.version = 11 : i64} {
  func.func @kernel(%arg0: i32, %arg1: memref<8x128xf32, #tpu.memory_space<vmem>>, %arg2: memref<128x128xf32, #tpu.memory_space<vmem>>, %arg3: memref<1x128xf32, #tpu.memory_space<vmem>>, %arg4: memref<128x128xf32, #tpu.memory_space<vmem>>, %arg5: memref<1x128xf32, #tpu.memory_space<vmem>>, %arg6: memref<128x128xf32, #tpu.memory_space<vmem>>, %arg7: memref<1x128xf32, #tpu.memory_space<vmem>>, %arg8: memref<128x128xf32, #tpu.memory_space<vmem>>, %arg9: memref<1x128xf32, #tpu.memory_space<vmem>>, %arg10: memref<128x128xf32, #tpu.memory_space<vmem>>, %arg11: memref<1x128xf32, #tpu.memory_space<vmem>>, %arg12: memref<128x128xf32, #tpu.memory_space<vmem>>, %arg13: memref<1x128xf32, #tpu.memory_space<vmem>>, %arg14: memref<128x128xf32, #tpu.memory_space<vmem>>, %arg15: memref<1x128xf32, #tpu.memory_space<vmem>>, %arg16: memref<8x128xf32, #tpu.memory_space<vmem>>) attributes {dimension_semantics = [#tpu.dimension_semantics<parallel>], iteration_bounds = array<i64: 1>, scalar_prefetch = 0 : i64, scratch_operands = 0 : i64, tpu.core_type = #tpu.core_type<tc>, window_params = [{transform_indices = @transform_0, window_bounds = array<i64: 8, 128>}, {pipeline_mode = #tpu.pipeline_mode<synchronous>, transform_indices = @transform_1, window_bounds = array<i64: 128, 128>}, {pipeline_mode = #tpu.pipeline_mode<synchronous>, transform_indices = @transform_2, window_bounds = array<i64: 1, 128>}, {pipeline_mode = #tpu.pipeline_mode<synchronous>, transform_indices = @transform_3, window_bounds = array<i64: 128, 128>}, {pipeline_mode = #tpu.pipeline_mode<synchronous>, transform_indices = @transform_4, window_bounds = array<i64: 1, 128>}, {pipeline_mode = #tpu.pipeline_mode<synchronous>, transform_indices = @transform_5, window_bounds = array<i64: 128, 128>}, {pipeline_mode = #tpu.pipeline_mode<synchronous>, transform_indices = @transform_6, window_bounds = array<i64: 1, 128>}, {pipeline_mode = #tpu.pipeline_mode<synchronous>, transform_indices = @transform_7, window_bounds = array<i64: 128, 128>}, {pipeline_mode = #tpu.pipeline_mode<synchronous>, transform_indices = @transform_8, window_bounds = array<i64: 1, 128>}, {pipeline_mode = #tpu.pipeline_mode<synchronous>, transform_indices = @transform_9, window_bounds = array<i64: 128, 128>}, {pipeline_mode = #tpu.pipeline_mode<synchronous>, transform_indices = @transform_10, window_bounds = array<i64: 1, 128>}, {pipeline_mode = #tpu.pipeline_mode<synchronous>, transform_indices = @transform_11, window_bounds = array<i64: 128, 128>}, {pipeline_mode = #tpu.pipeline_mode<synchronous>, transform_indices = @transform_12, window_bounds = array<i64: 1, 128>}, {pipeline_mode = #tpu.pipeline_mode<synchronous>, transform_indices = @transform_13, window_bounds = array<i64: 128, 128>}, {pipeline_mode = #tpu.pipeline_mode<synchronous>, transform_indices = @transform_14, window_bounds = array<i64: 1, 128>}, {transform_indices = @transform_15, window_bounds = array<i64: 8, 128>}]} {
    %c0 = arith.constant 0 : index
    %c0_0 = arith.constant 0 : index
    %0 = vector.load %arg1[%c0, %c0_0] : memref<8x128xf32, #tpu.memory_space<vmem>>, vector<8x128xf32>
    %c0_1 = arith.constant 0 : index
    %c0_2 = arith.constant 0 : index
    %1 = vector.load %arg2[%c0_1, %c0_2] : memref<128x128xf32, #tpu.memory_space<vmem>>, vector<128x128xf32>
    %c0_3 = arith.constant 0 : index
    %c0_4 = arith.constant 0 : index
    %2 = vector.load %arg3[%c0_3, %c0_4] : memref<1x128xf32, #tpu.memory_space<vmem>>, vector<1x128xf32>
    %cst = arith.constant dense<0.000000e+00> : vector<8x128xf32>
    %3 = tpu.matmul %0, %1, %cst {dimension_numbers = #tpu.dot_dimension_numbers<[1], [0], [0], [1], [0, 0, 1, 1], [], []>} : vector<8x128xf32>, vector<128x128xf32>, vector<8x128xf32> -> vector<8x128xf32>
    %4 = vector.broadcast %2 : vector<1x128xf32> to vector<8x128xf32>
    %5 = arith.addf %3, %4 : vector<8x128xf32>
    %cst_5 = arith.constant 0.000000e+00 : f32
    %6 = vector.broadcast %cst_5 : f32 to vector<8x128xf32>
    %7 = arith.maximumf %5, %6 : vector<8x128xf32>
    %c0_6 = arith.constant 0 : index
    %c0_7 = arith.constant 0 : index
    %8 = vector.load %arg4[%c0_6, %c0_7] : memref<128x128xf32, #tpu.memory_space<vmem>>, vector<128x128xf32>
    %c0_8 = arith.constant 0 : index
    %c0_9 = arith.constant 0 : index
    %9 = vector.load %arg5[%c0_8, %c0_9] : memref<1x128xf32, #tpu.memory_space<vmem>>, vector<1x128xf32>
    %c0_10 = arith.constant 0 : index
    %c0_11 = arith.constant 0 : index
    %10 = vector.load %arg6[%c0_10, %c0_11] : memref<128x128xf32, #tpu.memory_space<vmem>>, vector<128x128xf32>
    %c0_12 = arith.constant 0 : index
    %c0_13 = arith.constant 0 : index
    %11 = vector.load %arg7[%c0_12, %c0_13] : memref<1x128xf32, #tpu.memory_space<vmem>>, vector<1x128xf32>
    %cst_14 = arith.constant dense<0.000000e+00> : vector<8x128xf32>
    %12 = tpu.matmul %7, %8, %cst_14 {dimension_numbers = #tpu.dot_dimension_numbers<[1], [0], [0], [1], [0, 0, 1, 1], [], []>} : vector<8x128xf32>, vector<128x128xf32>, vector<8x128xf32> -> vector<8x128xf32>
    %13 = vector.broadcast %9 : vector<1x128xf32> to vector<8x128xf32>
    %14 = arith.addf %12, %13 : vector<8x128xf32>
    %cst_15 = arith.constant 0.000000e+00 : f32
    %15 = vector.broadcast %cst_15 : f32 to vector<8x128xf32>
    %16 = arith.maximumf %14, %15 : vector<8x128xf32>
    %cst_16 = arith.constant dense<0.000000e+00> : vector<8x128xf32>
    %17 = tpu.matmul %16, %10, %cst_16 {dimension_numbers = #tpu.dot_dimension_numbers<[1], [0], [0], [1], [0, 0, 1, 1], [], []>} : vector<8x128xf32>, vector<128x128xf32>, vector<8x128xf32> -> vector<8x128xf32>
    %18 = vector.broadcast %11 : vector<1x128xf32> to vector<8x128xf32>
    %19 = arith.addf %17, %18 : vector<8x128xf32>
    %20 = arith.addf %19, %7 : vector<8x128xf32>
    %cst_17 = arith.constant 0.000000e+00 : f32
    %21 = vector.broadcast %cst_17 : f32 to vector<8x128xf32>
    %22 = arith.maximumf %20, %21 : vector<8x128xf32>
    %c0_18 = arith.constant 0 : index
    %c0_19 = arith.constant 0 : index
    %23 = vector.load %arg8[%c0_18, %c0_19] : memref<128x128xf32, #tpu.memory_space<vmem>>, vector<128x128xf32>
    %c0_20 = arith.constant 0 : index
    %c0_21 = arith.constant 0 : index
    %24 = vector.load %arg9[%c0_20, %c0_21] : memref<1x128xf32, #tpu.memory_space<vmem>>, vector<1x128xf32>
    %c0_22 = arith.constant 0 : index
    %c0_23 = arith.constant 0 : index
    %25 = vector.load %arg10[%c0_22, %c0_23] : memref<128x128xf32, #tpu.memory_space<vmem>>, vector<128x128xf32>
    %c0_24 = arith.constant 0 : index
    %c0_25 = arith.constant 0 : index
    %26 = vector.load %arg11[%c0_24, %c0_25] : memref<1x128xf32, #tpu.memory_space<vmem>>, vector<1x128xf32>
    %c0_26 = arith.constant 0 : index
    %c0_27 = arith.constant 0 : index
    %27 = vector.load %arg12[%c0_26, %c0_27] : memref<128x128xf32, #tpu.memory_space<vmem>>, vector<128x128xf32>
    %c0_28 = arith.constant 0 : index
    %c0_29 = arith.constant 0 : index
    %28 = vector.load %arg13[%c0_28, %c0_29] : memref<1x128xf32, #tpu.memory_space<vmem>>, vector<1x128xf32>
    %cst_30 = arith.constant dense<0.000000e+00> : vector<8x128xf32>
    %29 = tpu.matmul %22, %27, %cst_30 {dimension_numbers = #tpu.dot_dimension_numbers<[1], [0], [0], [1], [0, 0, 1, 1], [], []>} : vector<8x128xf32>, vector<128x128xf32>, vector<8x128xf32> -> vector<8x128xf32>
    %30 = vector.broadcast %28 : vector<1x128xf32> to vector<8x128xf32>
    %31 = arith.addf %29, %30 : vector<8x128xf32>
    %cst_31 = arith.constant dense<0.000000e+00> : vector<8x128xf32>
    %32 = tpu.matmul %22, %23, %cst_31 {dimension_numbers = #tpu.dot_dimension_numbers<[1], [0], [0], [1], [0, 0, 1, 1], [], []>} : vector<8x128xf32>, vector<128x128xf32>, vector<8x128xf32> -> vector<8x128xf32>
    %33 = vector.broadcast %24 : vector<1x128xf32> to vector<8x128xf32>
    %34 = arith.addf %32, %33 : vector<8x128xf32>
    %cst_32 = arith.constant 0.000000e+00 : f32
    %35 = vector.broadcast %cst_32 : f32 to vector<8x128xf32>
    %36 = arith.maximumf %34, %35 : vector<8x128xf32>
    %cst_33 = arith.constant dense<0.000000e+00> : vector<8x128xf32>
    %37 = tpu.matmul %36, %25, %cst_33 {dimension_numbers = #tpu.dot_dimension_numbers<[1], [0], [0], [1], [0, 0, 1, 1], [], []>} : vector<8x128xf32>, vector<128x128xf32>, vector<8x128xf32> -> vector<8x128xf32>
    %38 = vector.broadcast %26 : vector<1x128xf32> to vector<8x128xf32>
    %39 = arith.addf %37, %38 : vector<8x128xf32>
    %40 = arith.addf %39, %31 : vector<8x128xf32>
    %cst_34 = arith.constant 0.000000e+00 : f32
    %41 = vector.broadcast %cst_34 : f32 to vector<8x128xf32>
    %42 = arith.maximumf %40, %41 : vector<8x128xf32>
    %c0_35 = arith.constant 0 : index
    %c0_36 = arith.constant 0 : index
    %43 = vector.load %arg14[%c0_35, %c0_36] : memref<128x128xf32, #tpu.memory_space<vmem>>, vector<128x128xf32>
    %c0_37 = arith.constant 0 : index
    %c0_38 = arith.constant 0 : index
    %44 = vector.load %arg15[%c0_37, %c0_38] : memref<1x128xf32, #tpu.memory_space<vmem>>, vector<1x128xf32>
    %cst_39 = arith.constant dense<0.000000e+00> : vector<8x128xf32>
    %45 = tpu.matmul %42, %43, %cst_39 {dimension_numbers = #tpu.dot_dimension_numbers<[1], [0], [0], [1], [0, 0, 1, 1], [], []>} : vector<8x128xf32>, vector<128x128xf32>, vector<8x128xf32> -> vector<8x128xf32>
    %46 = vector.broadcast %44 : vector<1x128xf32> to vector<8x128xf32>
    %47 = arith.addf %45, %46 : vector<8x128xf32>
    %c0_40 = arith.constant 0 : index
    %c0_41 = arith.constant 0 : index
    %48 = vector.load %arg16[%c0_40, %c0_41] : memref<8x128xf32, #tpu.memory_space<vmem>>, vector<8x128xf32>
    tpu.vector_store %arg16[%c0_40, %c0_41], %47 {strides = array<i32>} : memref<8x128xf32, #tpu.memory_space<vmem>>, vector<8x128xf32>,
    return
  }
  func.func @transform_0(%arg0: i32) -> (i32, i32) {
    %c0_i32 = arith.constant 0 : i32
    %c0_i32_0 = arith.constant 0 : i32
    return %arg0, %c0_i32 : i32, i32
  }
  func.func @transform_1(%arg0: i32) -> (i32, i32) {
    %c0_i32 = arith.constant 0 : i32
    %c0_i32_0 = arith.constant 0 : i32
    %c0_i32_1 = arith.constant 0 : i32
    return %c0_i32, %c0_i32_0 : i32, i32
  }
  func.func @transform_2(%arg0: i32) -> (i32, i32) {
    %c0_i32 = arith.constant 0 : i32
    %c0_i32_0 = arith.constant 0 : i32
    %c0_i32_1 = arith.constant 0 : i32
    return %c0_i32, %c0_i32_0 : i32, i32
  }
  func.func @transform_3(%arg0: i32) -> (i32, i32) {
    %c0_i32 = arith.constant 0 : i32
    %c0_i32_0 = arith.constant 0 : i32
    %c0_i32_1 = arith.constant 0 : i32
    return %c0_i32, %c0_i32_0 : i32, i32
  }
  func.func @transform_4(%arg0: i32) -> (i32, i32) {
    %c0_i32 = arith.constant 0 : i32
    %c0_i32_0 = arith.constant 0 : i32
    %c0_i32_1 = arith.constant 0 : i32
    return %c0_i32, %c0_i32_0 : i32, i32
  }
  func.func @transform_5(%arg0: i32) -> (i32, i32) {
    %c0_i32 = arith.constant 0 : i32
    %c0_i32_0 = arith.constant 0 : i32
    %c0_i32_1 = arith.constant 0 : i32
    return %c0_i32, %c0_i32_0 : i32, i32
  }
  func.func @transform_6(%arg0: i32) -> (i32, i32) {
    %c0_i32 = arith.constant 0 : i32
    %c0_i32_0 = arith.constant 0 : i32
    %c0_i32_1 = arith.constant 0 : i32
    return %c0_i32, %c0_i32_0 : i32, i32
  }
  func.func @transform_7(%arg0: i32) -> (i32, i32) {
    %c0_i32 = arith.constant 0 : i32
    %c0_i32_0 = arith.constant 0 : i32
    %c0_i32_1 = arith.constant 0 : i32
    return %c0_i32, %c0_i32_0 : i32, i32
  }
  func.func @transform_8(%arg0: i32) -> (i32, i32) {
    %c0_i32 = arith.constant 0 : i32
    %c0_i32_0 = arith.constant 0 : i32
    %c0_i32_1 = arith.constant 0 : i32
    return %c0_i32, %c0_i32_0 : i32, i32
  }
  func.func @transform_9(%arg0: i32) -> (i32, i32) {
    %c0_i32 = arith.constant 0 : i32
    %c0_i32_0 = arith.constant 0 : i32
    %c0_i32_1 = arith.constant 0 : i32
    return %c0_i32, %c0_i32_0 : i32, i32
  }
  func.func @transform_10(%arg0: i32) -> (i32, i32) {
    %c0_i32 = arith.constant 0 : i32
    %c0_i32_0 = arith.constant 0 : i32
    %c0_i32_1 = arith.constant 0 : i32
    return %c0_i32, %c0_i32_0 : i32, i32
  }
  func.func @transform_11(%arg0: i32) -> (i32, i32) {
    %c0_i32 = arith.constant 0 : i32
    %c0_i32_0 = arith.constant 0 : i32
    %c0_i32_1 = arith.constant 0 : i32
    return %c0_i32, %c0_i32_0 : i32, i32
  }
  func.func @transform_12(%arg0: i32) -> (i32, i32) {
    %c0_i32 = arith.constant 0 : i32
    %c0_i32_0 = arith.constant 0 : i32
    %c0_i32_1 = arith.constant 0 : i32
    return %c0_i32, %c0_i32_0 : i32, i32
  }
  func.func @transform_13(%arg0: i32) -> (i32, i32) {
    %c0_i32 = arith.constant 0 : i32
    %c0_i32_0 = arith.constant 0 : i32
    %c0_i32_1 = arith.constant 0 : i32
    return %c0_i32, %c0_i32_0 : i32, i32
  }
  func.func @transform_14(%arg0: i32) -> (i32, i32) {
    %c0_i32 = arith.constant 0 : i32
    %c0_i32_0 = arith.constant 0 : i32
    %c0_i32_1 = arith.constant 0 : i32
    return %c0_i32, %c0_i32_0 : i32, i32
  }
  func.func @transform_15(%arg0: i32) -> (i32, i32) {
    %c0_i32 = arith.constant 0 : i32
    %c0_i32_0 = arith.constant 0 : i32
    return %arg0, %c0_i32 : i32, i32
  }
}

</mosaic_0001>

<llo_original>
// kernel: feed_forward_resnet_forward.1
$region0: #{feed_forward_resnet_forward.1}
  #allocation0 [shape = 'u32[]', space=smem, size = 0x4, offset = 0x4, fixed_abs, tag = 'smem constant byte address 0x4 - core index']
  #allocation1 [shape = 'u32[144,128]{1,0:T(1,128)}', space=vmem, size = 0x12000, scoped, tag = 'internal scratch']
  %s0 = inlined_call_operand.vmem [shape: f32[8,128], index: 0, kind: input, shape index: {}]
  %s1 = inlined_call_operand.vmem [shape: f32[128,128], index: 1, kind: input, shape index: {}]
  %s2 = inlined_call_operand.vmem [shape: f32[1,128], index: 2, kind: input, shape index: {}]
  %s3 = inlined_call_operand.vmem [shape: f32[128,128], index: 3, kind: input, shape index: {}]
  %s4 = inlined_call_operand.vmem [shape: f32[1,128], index: 4, kind: input, shape index: {}]
  %s5 = inlined_call_operand.vmem [shape: f32[128,128], index: 5, kind: input, shape index: {}]
  %s6 = inlined_call_operand.vmem [shape: f32[1,128], index: 6, kind: input, shape index: {}]
  %s7 = inlined_call_operand.vmem [shape: f32[128,128], index: 7, kind: input, shape index: {}]
  %s8 = inlined_call_operand.vmem [shape: f32[1,128], index: 8, kind: input, shape index: {}]
  %s9 = inlined_call_operand.vmem [shape: f32[128,128], index: 9, kind: input, shape index: {}]
  %s10 = inlined_call_operand.vmem [shape: f32[1,128], index: 10, kind: input, shape index: {}]
  %s11 = inlined_call_operand.vmem [shape: f32[128,128], index: 11, kind: input, shape index: {}]
  %s12 = inlined_call_operand.vmem [shape: f32[1,128], index: 12, kind: input, shape index: {}]
  %s13 = inlined_call_operand.vmem [shape: f32[128,128], index: 13, kind: input, shape index: {}]
  %s14 = inlined_call_operand.vmem [shape: f32[1,128], index: 14, kind: input, shape index: {}]
  %s15 = inlined_call_operand.hbm [shape: f32[8,128], index: 15, kind: output, shape index: {}]
  %s16 = sld [smem:[#allocation0]]
  $region70: #{feed_forward_resnet_forward.1} parent=0
    _
  %s18 = ssub.s32 1, %s16
  %s19 = scalar_select 0, %s18, %s16
  $region1: #{feed_forward_resnet_forward.1} parent=0
    #allocation2 [shape = 'u8[4096]{0}', space=vmem, size = 0x1000, scoped, tag = 'output window, operand 0, single buffered']
    #allocation3 [shape = 's32[1]{0}', space=sflag, size = 0x4, scoped, tag = 'scoped memory for feed_forward_resnet_forward.1']
    %20 = vsyncpa [#allocation3], 0
    // Predicated region
    $region2: #{feed_forward_resnet_forward.1} parent=1 // pred_check
      _
    $region3: #{feed_forward_resnet_forward.1} parent=1 // pred_check_branch
      %22 = sbr.rel (0) target = $region5
    $region4: #{feed_forward_resnet_forward.1} parent=1 // pred_region
      _
    $region5: #{feed_forward_resnet_forward.1} parent=1 // pred_fallthru
      _
    // Predicated region
    $region6: #{feed_forward_resnet_forward.1} parent=1 // pred_check
      _
    $region7: #{feed_forward_resnet_forward.1} parent=1 // pred_check_branch
      %24 = sbr.rel (0) target = $region9
    $region8: #{feed_forward_resnet_forward.1} parent=1 // pred_region
      _
    $region9: #{feed_forward_resnet_forward.1} parent=1 // pred_fallthru
      _
    // Predicated region
    $region10: #{feed_forward_resnet_forward.1} parent=1 // pred_check
      _
    $region11: #{feed_forward_resnet_forward.1} parent=1 // pred_check_branch
      %26 = sbr.rel (0) target = $region13
    $region12: #{feed_forward_resnet_forward.1} parent=1 // pred_region
      _
    $region13: #{feed_forward_resnet_forward.1} parent=1 // pred_fallthru
      _
    // Predicated region
    $region14: #{feed_forward_resnet_forward.1} parent=1 // pred_check
      _
    $region15: #{feed_forward_resnet_forward.1} parent=1 // pred_check_branch
      %28 = sbr.rel (0) target = $region17
    $region16: #{feed_forward_resnet_forward.1} parent=1 // pred_region
      _
    $region17: #{feed_forward_resnet_forward.1} parent=1 // pred_fallthru
      _
    // Predicated region
    $region18: #{feed_forward_resnet_forward.1} parent=1 // pred_check
      _
    $region19: #{feed_forward_resnet_forward.1} parent=1 // pred_check_branch
      %30 = sbr.rel (0) target = $region21
    $region20: #{feed_forward_resnet_forward.1} parent=1 // pred_region
      _
    $region21: #{feed_forward_resnet_forward.1} parent=1 // pred_fallthru
      _
    // Predicated region
    $region22: #{feed_forward_resnet_forward.1} parent=1 // pred_check
      _
    $region23: #{feed_forward_resnet_forward.1} parent=1 // pred_check_branch
      %32 = sbr.rel (0) target = $region25
    $region24: #{feed_forward_resnet_forward.1} parent=1 // pred_region
      _
    $region25: #{feed_forward_resnet_forward.1} parent=1 // pred_fallthru
      _
    // Predicated region
    $region26: #{feed_forward_resnet_forward.1} parent=1 // pred_check
      _
    $region27: #{feed_forward_resnet_forward.1} parent=1 // pred_check_branch
      %34 = sbr.rel (0) target = $region29
    $region28: #{feed_forward_resnet_forward.1} parent=1 // pred_region
      _
    $region29: #{feed_forward_resnet_forward.1} parent=1 // pred_fallthru
      _
    // Predicated region
    $region30: #{feed_forward_resnet_forward.1} parent=1 // pred_check
      _
    $region31: #{feed_forward_resnet_forward.1} parent=1 // pred_check_branch
      %36 = sbr.rel (0) target = $region33
    $region32: #{feed_forward_resnet_forward.1} parent=1 // pred_region
      _
    $region33: #{feed_forward_resnet_forward.1} parent=1 // pred_fallthru
      _
    // Predicated region
    $region34: #{feed_forward_resnet_forward.1} parent=1 // pred_check
      _
    $region35: #{feed_forward_resnet_forward.1} parent=1 // pred_check_branch
      %38 = sbr.rel (0) target = $region37
    $region36: #{feed_forward_resnet_forward.1} parent=1 // pred_region
      _
    $region37: #{feed_forward_resnet_forward.1} parent=1 // pred_fallthru
      _
    // Predicated region
    $region38: #{feed_forward_resnet_forward.1} parent=1 // pred_check
      _
    $region39: #{feed_forward_resnet_forward.1} parent=1 // pred_check_branch
      %40 = sbr.rel (0) target = $region41
    $region40: #{feed_forward_resnet_forward.1} parent=1 // pred_region
      _
    $region41: #{feed_forward_resnet_forward.1} parent=1 // pred_fallthru
      _
    // Predicated region
    $region42: #{feed_forward_resnet_forward.1} parent=1 // pred_check
      _
    $region43: #{feed_forward_resnet_forward.1} parent=1 // pred_check_branch
      %42 = sbr.rel (0) target = $region45
    $region44: #{feed_forward_resnet_forward.1} parent=1 // pred_region
      _
    $region45: #{feed_forward_resnet_forward.1} parent=1 // pred_fallthru
      _
    // Predicated region
    $region46: #{feed_forward_resnet_forward.1} parent=1 // pred_check
      _
    $region47: #{feed_forward_resnet_forward.1} parent=1 // pred_check_branch
      %44 = sbr.rel (0) target = $region49
    $region48: #{feed_forward_resnet_forward.1} parent=1 // pred_region
      _
    $region49: #{feed_forward_resnet_forward.1} parent=1 // pred_fallthru
      _
    // Predicated region
    $region50: #{feed_forward_resnet_forward.1} parent=1 // pred_check
      _
    $region51: #{feed_forward_resnet_forward.1} parent=1 // pred_check_branch
      %46 = sbr.rel (0) target = $region53
    $region52: #{feed_forward_resnet_forward.1} parent=1 // pred_region
      _
    $region53: #{feed_forward_resnet_forward.1} parent=1 // pred_fallthru
      _
    // Predicated region
    $region54: #{feed_forward_resnet_forward.1} parent=1 // pred_check
      _
    $region55: #{feed_forward_resnet_forward.1} parent=1 // pred_check_branch
      %48 = sbr.rel (0) target = $region57
    $region56: #{feed_forward_resnet_forward.1} parent=1 // pred_region
      _
    $region57: #{feed_forward_resnet_forward.1} parent=1 // pred_fallthru
      _
    // Predicated region
    $region58: #{feed_forward_resnet_forward.1} parent=1 // pred_check
      _
    $region59: #{feed_forward_resnet_forward.1} parent=1 // pred_check_branch
      %50 = sbr.rel (0) target = $region61
    $region60: #{feed_forward_resnet_forward.1} parent=1 // pred_region
      _
    $region61: #{feed_forward_resnet_forward.1} parent=1 // pred_fallthru
      _
    %v51 = vld [vmem:[%s0] sm:$0xff]
    %v52 = vld [vmem:[%s1] sm:$0xff]
    %v53 = vld [vmem:[%s1 + $0x8] sm:$0xff]
    %v54 = vld [vmem:[%s1 + $0x10] sm:$0xff]
    %v55 = vld [vmem:[%s1 + $0x18] sm:$0xff]
    %v56 = vld [vmem:[%s1 + $0x20] sm:$0xff]
    %v57 = vld [vmem:[%s1 + $0x28] sm:$0xff]
    %v58 = vld [vmem:[%s1 + $0x30] sm:$0xff]
    %v59 = vld [vmem:[%s1 + $0x38] sm:$0xff]
    %v60 = vld [vmem:[%s1 + $0x40] sm:$0xff]
    %v61 = vld [vmem:[%s1 + $0x48] sm:$0xff]
    %v62 = vld [vmem:[%s1 + $0x50] sm:$0xff]
    %v63 = vld [vmem:[%s1 + $0x58] sm:$0xff]
    %v64 = vld [vmem:[%s1 + $0x60] sm:$0xff]
    %v65 = vld [vmem:[%s1 + $0x68] sm:$0xff]
    %v66 = vld [vmem:[%s1 + $0x70] sm:$0xff]
    %v67 = vld [vmem:[%s1 + $0x78] sm:$0xff]
    %v68 = vld [vmem:[%s2] sm:$0x1]
    %v70 = vlaneseq
    %v71 = vshrl.u32 %v70, 7
    %v72 = vsub.s32 0, %v71
    %v73 = vrot.slane %v68, %v72
    %75 = vmatprep.subr.mxu0 0.0
    %76 = vmatpush1.msra.mxu0 %v52
    %77 = vmatprep.subr.mxu0 0.0
    %78 = vmatpush1.msra.mxu0 %v53
    %79 = vmatprep.subr.mxu0 0.0
    %80 = vmatpush1.msra.mxu0 %v54
    %81 = vmatprep.subr.mxu0 0.0
    %82 = vmatpush1.msra.mxu0 %v55
    %83 = vmatprep.subr.mxu0 0.0
    %84 = vmatpush1.msra.mxu0 %v56
    %85 = vmatprep.subr.mxu0 0.0
    %86 = vmatpush1.msra.mxu0 %v57
    %87 = vmatprep.subr.mxu0 0.0
    %88 = vmatpush1.msra.mxu0 %v58
    %89 = vmatprep.subr.mxu0 0.0
    %90 = vmatpush1.msra.mxu0 %v59
    %91 = vmatprep.subr.mxu0 0.0
    %92 = vmatpush1.msra.mxu0 %v60
    %93 = vmatprep.subr.mxu0 0.0
    %94 = vmatpush1.msra.mxu0 %v61
    %95 = vmatprep.subr.mxu0 0.0
    %96 = vmatpush1.msra.mxu0 %v62
    %97 = vmatprep.subr.mxu0 0.0
    %98 = vmatpush1.msra.mxu0 %v63
    %99 = vmatprep.subr.mxu0 0.0
    %100 = vmatpush1.msra.mxu0 %v64
    %101 = vmatprep.subr.mxu0 0.0
    %102 = vmatpush1.msra.mxu0 %v65
    %103 = vmatprep.subr.mxu0 0.0
    %104 = vmatpush1.msra.mxu0 %v66
    %105 = vmatprep.subr.mxu0 0.0
    %106 = vmatpush1.msra.mxu0 %v67
    %107 = vmatprep.subr.mxu0 0.0
    %108 = vmatpush1.msra.mxu0 0.0
    %109 = vmatprep.subr.mxu0 0.0
    %110 = vmatpush1.msra.mxu0 0.0
    %111 = vmatprep.subr.mxu0 0.0
    %112 = vmatpush1.msra.mxu0 0.0
    %113 = vmatprep.subr.mxu0 0.0
    %114 = vmatpush1.msra.mxu0 0.0
    %115 = vmatprep.subr.mxu0 0.0
    %116 = vmatpush1.msra.mxu0 0.0
    %117 = vmatprep.subr.mxu0 0.0
    %118 = vmatpush1.msra.mxu0 0.0
    %119 = vmatprep.subr.mxu0 0.0
    %120 = vmatpush1.msra.mxu0 0.0
    %121 = vmatprep.subr.mxu0 0.0
    %122 = vmatpush1.msra.mxu0 0.0
    %123 = vmatprep.subr.mxu0 0.0
    %124 = vmatpush1.msra.mxu0 0.0
    %125 = vmatprep.subr.mxu0 0.0
    %126 = vmatpush1.msra.mxu0 0.0
    %127 = vmatprep.subr.mxu0 0.0
    %128 = vmatpush1.msra.mxu0 0.0
    %129 = vmatprep.subr.mxu0 0.0
    %130 = vmatpush1.msra.mxu0 0.0
    %131 = vmatprep.subr.mxu0 0.0
    %132 = vmatpush1.msra.mxu0 0.0
    %133 = vmatprep.subr.mxu0 0.0
    %134 = vmatpush1.msra.mxu0 0.0
    %135 = vmatprep.subr.mxu0 0.0
    %136 = vmatpush1.msra.mxu0 0.0
    %137 = vmatprep.subr.mxu0 0.0
    %138 = vmatpush1.msra.mxu0 0.0
    %139 = vmatprep.mubr.f32.mxu0 0.0
    %140 = vmatmul.mubr.f32.gmra.mrb[0].mxu0 %v51
    %v141 = vpop.f32.mrb[0].mxu0
    %v142 = vadd.f32 %v73, %v141
    %v143 = vpop.f32.mrb[0].mxu0
    %144 = vdwg.mxu0
    %v145 = vmax.f32 %v142, 0.0
    %v146 = vld [vmem:[%s3] sm:$0xff]
    %v147 = vld [vmem:[%s3 + $0x8] sm:$0xff]
    %v148 = vld [vmem:[%s3 + $0x10] sm:$0xff]
    %v149 = vld [vmem:[%s3 + $0x18] sm:$0xff]
    %v150 = vld [vmem:[%s3 + $0x20] sm:$0xff]
    %v151 = vld [vmem:[%s3 + $0x28] sm:$0xff]
    %v152 = vld [vmem:[%s3 + $0x30] sm:$0xff]
    %v153 = vld [vmem:[%s3 + $0x38] sm:$0xff]
    %v154 = vld [vmem:[%s3 + $0x40] sm:$0xff]
    %v155 = vld [vmem:[%s3 + $0x48] sm:$0xff]
    %v156 = vld [vmem:[%s3 + $0x50] sm:$0xff]
    %v157 = vld [vmem:[%s3 + $0x58] sm:$0xff]
    %v158 = vld [vmem:[%s3 + $0x60] sm:$0xff]
    %v159 = vld [vmem:[%s3 + $0x68] sm:$0xff]
    %v160 = vld [vmem:[%s3 + $0x70] sm:$0xff]
    %v161 = vld [vmem:[%s3 + $0x78] sm:$0xff]
    %v162 = vld [vmem:[%s4] sm:$0x1]
    %v163 = vld [vmem:[%s5] sm:$0xff]
    %v164 = vld [vmem:[%s5 + $0x8] sm:$0xff]
    %v165 = vld [vmem:[%s5 + $0x10] sm:$0xff]
    %v166 = vld [vmem:[%s5 + $0x18] sm:$0xff]
    %v167 = vld [vmem:[%s5 + $0x20] sm:$0xff]
    %v168 = vld [vmem:[%s5 + $0x28] sm:$0xff]
    %v169 = vld [vmem:[%s5 + $0x30] sm:$0xff]
    %v170 = vld [vmem:[%s5 + $0x38] sm:$0xff]
    %v171 = vld [vmem:[%s5 + $0x40] sm:$0xff]
    %v172 = vld [vmem:[%s5 + $0x48] sm:$0xff]
    %v173 = vld [vmem:[%s5 + $0x50] sm:$0xff]
    %v174 = vld [vmem:[%s5 + $0x58] sm:$0xff]
    %v175 = vld [vmem:[%s5 + $0x60] sm:$0xff]
    %v176 = vld [vmem:[%s5 + $0x68] sm:$0xff]
    %v177 = vld [vmem:[%s5 + $0x70] sm:$0xff]
    %v178 = vld [vmem:[%s5 + $0x78] sm:$0xff]
    %v179 = vld [vmem:[%s6] sm:$0x1]
    %v181 = vlaneseq
    %v182 = vshrl.u32 %v181, 7
    %v183 = vsub.s32 0, %v182
    %v184 = vrot.slane %v162, %v183
    %186 = vmatprep.subr.mxu0 0.0
    %187 = vmatpush1.msra.mxu0 %v146
    %188 = vmatprep.subr.mxu0 0.0
    %189 = vmatpush1.msra.mxu0 %v147
    %190 = vmatprep.subr.mxu0 0.0
    %191 = vmatpush1.msra.mxu0 %v148
    %192 = vmatprep.subr.mxu0 0.0
    %193 = vmatpush1.msra.mxu0 %v149
    %194 = vmatprep.subr.mxu0 0.0
    %195 = vmatpush1.msra.mxu0 %v150
    %196 = vmatprep.subr.mxu0 0.0
    %197 = vmatpush1.msra.mxu0 %v151
    %198 = vmatprep.subr.mxu0 0.0
    %199 = vmatpush1.msra.mxu0 %v152
    %200 = vmatprep.subr.mxu0 0.0
    %201 = vmatpush1.msra.mxu0 %v153
    %202 = vmatprep.subr.mxu0 0.0
    %203 = vmatpush1.msra.mxu0 %v154
    %204 = vmatprep.subr.mxu0 0.0
    %205 = vmatpush1.msra.mxu0 %v155
    %206 = vmatprep.subr.mxu0 0.0
    %207 = vmatpush1.msra.mxu0 %v156
    %208 = vmatprep.subr.mxu0 0.0
    %209 = vmatpush1.msra.mxu0 %v157
    %210 = vmatprep.subr.mxu0 0.0
    %211 = vmatpush1.msra.mxu0 %v158
    %212 = vmatprep.subr.mxu0 0.0
    %213 = vmatpush1.msra.mxu0 %v159
    %214 = vmatprep.subr.mxu0 0.0
    %215 = vmatpush1.msra.mxu0 %v160
    %216 = vmatprep.subr.mxu0 0.0
    %217 = vmatpush1.msra.mxu0 %v161
    %218 = vmatprep.subr.mxu0 0.0
    %219 = vmatpush1.msra.mxu0 0.0
    %220 = vmatprep.subr.mxu0 0.0
    %221 = vmatpush1.msra.mxu0 0.0
    %222 = vmatprep.subr.mxu0 0.0
    %223 = vmatpush1.msra.mxu0 0.0
    %224 = vmatprep.subr.mxu0 0.0
    %225 = vmatpush1.msra.mxu0 0.0
    %226 = vmatprep.subr.mxu0 0.0
    %227 = vmatpush1.msra.mxu0 0.0
    %228 = vmatprep.subr.mxu0 0.0
    %229 = vmatpush1.msra.mxu0 0.0
    %230 = vmatprep.subr.mxu0 0.0
    %231 = vmatpush1.msra.mxu0 0.0
    %232 = vmatprep.subr.mxu0 0.0
    %233 = vmatpush1.msra.mxu0 0.0
    %234 = vmatprep.subr.mxu0 0.0
    %235 = vmatpush1.msra.mxu0 0.0
    %236 = vmatprep.subr.mxu0 0.0
    %237 = vmatpush1.msra.mxu0 0.0
    %238 = vmatprep.subr.mxu0 0.0
    %239 = vmatpush1.msra.mxu0 0.0
    %240 = vmatprep.subr.mxu0 0.0
    %241 = vmatpush1.msra.mxu0 0.0
    %242 = vmatprep.subr.mxu0 0.0
    %243 = vmatpush1.msra.mxu0 0.0
    %244 = vmatprep.subr.mxu0 0.0
    %245 = vmatpush1.msra.mxu0 0.0
    %246 = vmatprep.subr.mxu0 0.0
    %247 = vmatpush1.msra.mxu0 0.0
    %248 = vmatprep.subr.mxu0 0.0
    %249 = vmatpush1.msra.mxu0 0.0
    %250 = vmatprep.mubr.f32.mxu0 0.0
    %251 = vmatmul.mubr.f32.gmra.mrb[0].mxu0 %v145
    %v252 = vpop.f32.mrb[0].mxu0
    %v253 = vadd.f32 %v184, %v252
    %v254 = vpop.f32.mrb[0].mxu0
    %255 = vdwg.mxu0
    %v256 = vmax.f32 %v253, 0.0
    %v258 = vlaneseq
    %v259 = vshrl.u32 %v258, 7
    %v260 = vsub.s32 0, %v259
    %v261 = vrot.slane %v179, %v260
    %263 = vmatprep.subr.mxu0 0.0
    %264 = vmatpush1.msra.mxu0 %v163
    %265 = vmatprep.subr.mxu0 0.0
    %266 = vmatpush1.msra.mxu0 %v164
    %267 = vmatprep.subr.mxu0 0.0
    %268 = vmatpush1.msra.mxu0 %v165
    %269 = vmatprep.subr.mxu0 0.0
    %270 = vmatpush1.msra.mxu0 %v166
    %271 = vmatprep.subr.mxu0 0.0
    %272 = vmatpush1.msra.mxu0 %v167
    %273 = vmatprep.subr.mxu0 0.0
    %274 = vmatpush1.msra.mxu0 %v168
    %275 = vmatprep.subr.mxu0 0.0
    %276 = vmatpush1.msra.mxu0 %v169
    %277 = vmatprep.subr.mxu0 0.0
    %278 = vmatpush1.msra.mxu0 %v170
    %279 = vmatprep.subr.mxu0 0.0
    %280 = vmatpush1.msra.mxu0 %v171
    %281 = vmatprep.subr.mxu0 0.0
    %282 = vmatpush1.msra.mxu0 %v172
    %283 = vmatprep.subr.mxu0 0.0
    %284 = vmatpush1.msra.mxu0 %v173
    %285 = vmatprep.subr.mxu0 0.0
    %286 = vmatpush1.msra.mxu0 %v174
    %287 = vmatprep.subr.mxu0 0.0
    %288 = vmatpush1.msra.mxu0 %v175
    %289 = vmatprep.subr.mxu0 0.0
    %290 = vmatpush1.msra.mxu0 %v176
    %291 = vmatprep.subr.mxu0 0.0
    %292 = vmatpush1.msra.mxu0 %v177
    %293 = vmatprep.subr.mxu0 0.0
    %294 = vmatpush1.msra.mxu0 %v178
    %295 = vmatprep.subr.mxu0 0.0
    %296 = vmatpush1.msra.mxu0 0.0
    %297 = vmatprep.subr.mxu0 0.0
    %298 = vmatpush1.msra.mxu0 0.0
    %299 = vmatprep.subr.mxu0 0.0
    %300 = vmatpush1.msra.mxu0 0.0
    %301 = vmatprep.subr.mxu0 0.0
    %302 = vmatpush1.msra.mxu0 0.0
    %303 = vmatprep.subr.mxu0 0.0
    %304 = vmatpush1.msra.mxu0 0.0
    %305 = vmatprep.subr.mxu0 0.0
    %306 = vmatpush1.msra.mxu0 0.0
    %307 = vmatprep.subr.mxu0 0.0
    %308 = vmatpush1.msra.mxu0 0.0
    %309 = vmatprep.subr.mxu0 0.0
    %310 = vmatpush1.msra.mxu0 0.0
    %311 = vmatprep.subr.mxu0 0.0
    %312 = vmatpush1.msra.mxu0 0.0
    %313 = vmatprep.subr.mxu0 0.0
    %314 = vmatpush1.msra.mxu0 0.0
    %315 = vmatprep.subr.mxu0 0.0
    %316 = vmatpush1.msra.mxu0 0.0
    %317 = vmatprep.subr.mxu0 0.0
    %318 = vmatpush1.msra.mxu0 0.0
    %319 = vmatprep.subr.mxu0 0.0
    %320 = vmatpush1.msra.mxu0 0.0
    %321 = vmatprep.subr.mxu0 0.0
    %322 = vmatpush1.msra.mxu0 0.0
    %323 = vmatprep.subr.mxu0 0.0
    %324 = vmatpush1.msra.mxu0 0.0
    %325 = vmatprep.subr.mxu0 0.0
    %326 = vmatpush1.msra.mxu0 0.0
    %327 = vmatprep.mubr.f32.mxu0 0.0
    %328 = vmatmul.mubr.f32.gmra.mrb[0].mxu0 %v256
    %v329 = vpop.f32.mrb[0].mxu0
    %v330 = vadd.f32 %v261, %v329
    %v331 = vpop.f32.mrb[0].mxu0
    %332 = vdwg.mxu0
    %v333 = vadd.f32 %v330, %v145
    %v334 = vmax.f32 %v333, 0.0
    %v335 = vld [vmem:[%s7] sm:$0xff]
    %v336 = vld [vmem:[%s7 + $0x8] sm:$0xff]
    %v337 = vld [vmem:[%s7 + $0x10] sm:$0xff]
    %v338 = vld [vmem:[%s7 + $0x18] sm:$0xff]
    %v339 = vld [vmem:[%s7 + $0x20] sm:$0xff]
    %v340 = vld [vmem:[%s7 + $0x28] sm:$0xff]
    %v341 = vld [vmem:[%s7 + $0x30] sm:$0xff]
    %v342 = vld [vmem:[%s7 + $0x38] sm:$0xff]
    %v343 = vld [vmem:[%s7 + $0x40] sm:$0xff]
    %v344 = vld [vmem:[%s7 + $0x48] sm:$0xff]
    %v345 = vld [vmem:[%s7 + $0x50] sm:$0xff]
    %v346 = vld [vmem:[%s7 + $0x58] sm:$0xff]
    %v347 = vld [vmem:[%s7 + $0x60] sm:$0xff]
    %v348 = vld [vmem:[%s7 + $0x68] sm:$0xff]
    %v349 = vld [vmem:[%s7 + $0x70] sm:$0xff]
    %v350 = vld [vmem:[%s7 + $0x78] sm:$0xff]
    %v351 = vld [vmem:[%s8] sm:$0x1]
    %v352 = vld [vmem:[%s9] sm:$0xff]
    %v353 = vld [vmem:[%s9 + $0x8] sm:$0xff]
    %v354 = vld [vmem:[%s9 + $0x10] sm:$0xff]
    %v355 = vld [vmem:[%s9 + $0x18] sm:$0xff]
    %v356 = vld [vmem:[%s9 + $0x20] sm:$0xff]
    %v357 = vld [vmem:[%s9 + $0x28] sm:$0xff]
    %v358 = vld [vmem:[%s9 + $0x30] sm:$0xff]
    %v359 = vld [vmem:[%s9 + $0x38] sm:$0xff]
    %v360 = vld [vmem:[%s9 + $0x40] sm:$0xff]
    %v361 = vld [vmem:[%s9 + $0x48] sm:$0xff]
    %v362 = vld [vmem:[%s9 + $0x50] sm:$0xff]
    %v363 = vld [vmem:[%s9 + $0x58] sm:$0xff]
    %v364 = vld [vmem:[%s9 + $0x60] sm:$0xff]
    %v365 = vld [vmem:[%s9 + $0x68] sm:$0xff]
    %v366 = vld [vmem:[%s9 + $0x70] sm:$0xff]
    %v367 = vld [vmem:[%s9 + $0x78] sm:$0xff]
    %v368 = vld [vmem:[%s10] sm:$0x1]
    %v369 = vld [vmem:[%s11] sm:$0xff]
    %v370 = vld [vmem:[%s11 + $0x8] sm:$0xff]
    %v371 = vld [vmem:[%s11 + $0x10] sm:$0xff]
    %v372 = vld [vmem:[%s11 + $0x18] sm:$0xff]
    %v373 = vld [vmem:[%s11 + $0x20] sm:$0xff]
    %v374 = vld [vmem:[%s11 + $0x28] sm:$0xff]
    %v375 = vld [vmem:[%s11 + $0x30] sm:$0xff]
    %v376 = vld [vmem:[%s11 + $0x38] sm:$0xff]
    %v377 = vld [vmem:[%s11 + $0x40] sm:$0xff]
    %v378 = vld [vmem:[%s11 + $0x48] sm:$0xff]
    %v379 = vld [vmem:[%s11 + $0x50] sm:$0xff]
    %v380 = vld [vmem:[%s11 + $0x58] sm:$0xff]
    %v381 = vld [vmem:[%s11 + $0x60] sm:$0xff]
    %v382 = vld [vmem:[%s11 + $0x68] sm:$0xff]
    %v383 = vld [vmem:[%s11 + $0x70] sm:$0xff]
    %v384 = vld [vmem:[%s11 + $0x78] sm:$0xff]
    %v385 = vld [vmem:[%s12] sm:$0x1]
    %v387 = vlaneseq
    %v388 = vshrl.u32 %v387, 7
    %v389 = vsub.s32 0, %v388
    %v390 = vrot.slane %v385, %v389
    %392 = vmatprep.subr.mxu0 0.0
    %393 = vmatpush1.msra.mxu0 %v369
    %394 = vmatprep.subr.mxu0 0.0
    %395 = vmatpush1.msra.mxu0 %v370
    %396 = vmatprep.subr.mxu0 0.0
    %397 = vmatpush1.msra.mxu0 %v371
    %398 = vmatprep.subr.mxu0 0.0
    %399 = vmatpush1.msra.mxu0 %v372
    %400 = vmatprep.subr.mxu0 0.0
    %401 = vmatpush1.msra.mxu0 %v373
    %402 = vmatprep.subr.mxu0 0.0
    %403 = vmatpush1.msra.mxu0 %v374
    %404 = vmatprep.subr.mxu0 0.0
    %405 = vmatpush1.msra.mxu0 %v375
    %406 = vmatprep.subr.mxu0 0.0
    %407 = vmatpush1.msra.mxu0 %v376
    %408 = vmatprep.subr.mxu0 0.0
    %409 = vmatpush1.msra.mxu0 %v377
    %410 = vmatprep.subr.mxu0 0.0
    %411 = vmatpush1.msra.mxu0 %v378
    %412 = vmatprep.subr.mxu0 0.0
    %413 = vmatpush1.msra.mxu0 %v379
    %414 = vmatprep.subr.mxu0 0.0
    %415 = vmatpush1.msra.mxu0 %v380
    %416 = vmatprep.subr.mxu0 0.0
    %417 = vmatpush1.msra.mxu0 %v381
    %418 = vmatprep.subr.mxu0 0.0
    %419 = vmatpush1.msra.mxu0 %v382
    %420 = vmatprep.subr.mxu0 0.0
    %421 = vmatpush1.msra.mxu0 %v383
    %422 = vmatprep.subr.mxu0 0.0
    %423 = vmatpush1.msra.mxu0 %v384
    %424 = vmatprep.subr.mxu0 0.0
    %425 = vmatpush1.msra.mxu0 0.0
    %426 = vmatprep.subr.mxu0 0.0
    %427 = vmatpush1.msra.mxu0 0.0
    %428 = vmatprep.subr.mxu0 0.0
    %429 = vmatpush1.msra.mxu0 0.0
    %430 = vmatprep.subr.mxu0 0.0
    %431 = vmatpush1.msra.mxu0 0.0
    %432 = vmatprep.subr.mxu0 0.0
    %433 = vmatpush1.msra.mxu0 0.0
    %434 = vmatprep.subr.mxu0 0.0
    %435 = vmatpush1.msra.mxu0 0.0
    %436 = vmatprep.subr.mxu0 0.0
    %437 = vmatpush1.msra.mxu0 0.0
    %438 = vmatprep.subr.mxu0 0.0
    %439 = vmatpush1.msra.mxu0 0.0
    %440 = vmatprep.subr.mxu0 0.0
    %441 = vmatpush1.msra.mxu0 0.0
    %442 = vmatprep.subr.mxu0 0.0
    %443 = vmatpush1.msra.mxu0 0.0
    %444 = vmatprep.subr.mxu0 0.0
    %445 = vmatpush1.msra.mxu0 0.0
    %446 = vmatprep.subr.mxu0 0.0
    %447 = vmatpush1.msra.mxu0 0.0
    %448 = vmatprep.subr.mxu0 0.0
    %449 = vmatpush1.msra.mxu0 0.0
    %450 = vmatprep.subr.mxu0 0.0
    %451 = vmatpush1.msra.mxu0 0.0
    %452 = vmatprep.subr.mxu0 0.0
    %453 = vmatpush1.msra.mxu0 0.0
    %454 = vmatprep.subr.mxu0 0.0
    %455 = vmatpush1.msra.mxu0 0.0
    %456 = vmatprep.mubr.f32.mxu0 0.0
    %457 = vmatmul.mubr.f32.gmra.mrb[0].mxu0 %v334
    %v458 = vpop.f32.mrb[0].mxu0
    %v459 = vadd.f32 %v390, %v458
    %v460 = vpop.f32.mrb[0].mxu0
    %461 = vdwg.mxu0
    %v463 = vlaneseq
    %v464 = vshrl.u32 %v463, 7
    %v465 = vsub.s32 0, %v464
    %v466 = vrot.slane %v351, %v465
    %468 = vmatprep.subr.mxu0 0.0
    %469 = vmatpush1.msra.mxu0 %v335
    %470 = vmatprep.subr.mxu0 0.0
    %471 = vmatpush1.msra.mxu0 %v336
    %472 = vmatprep.subr.mxu0 0.0
    %473 = vmatpush1.msra.mxu0 %v337
    %474 = vmatprep.subr.mxu0 0.0
    %475 = vmatpush1.msra.mxu0 %v338
    %476 = vmatprep.subr.mxu0 0.0
    %477 = vmatpush1.msra.mxu0 %v339
    %478 = vmatprep.subr.mxu0 0.0
    %479 = vmatpush1.msra.mxu0 %v340
    %480 = vmatprep.subr.mxu0 0.0
    %481 = vmatpush1.msra.mxu0 %v341
    %482 = vmatprep.subr.mxu0 0.0
    %483 = vmatpush1.msra.mxu0 %v342
    %484 = vmatprep.subr.mxu0 0.0
    %485 = vmatpush1.msra.mxu0 %v343
    %486 = vmatprep.subr.mxu0 0.0
    %487 = vmatpush1.msra.mxu0 %v344
    %488 = vmatprep.subr.mxu0 0.0
    %489 = vmatpush1.msra.mxu0 %v345
    %490 = vmatprep.subr.mxu0 0.0
    %491 = vmatpush1.msra.mxu0 %v346
    %492 = vmatprep.subr.mxu0 0.0
    %493 = vmatpush1.msra.mxu0 %v347
    %494 = vmatprep.subr.mxu0 0.0
    %495 = vmatpush1.msra.mxu0 %v348
    %496 = vmatprep.subr.mxu0 0.0
    %497 = vmatpush1.msra.mxu0 %v349
    %498 = vmatprep.subr.mxu0 0.0
    %499 = vmatpush1.msra.mxu0 %v350
    %500 = vmatprep.subr.mxu0 0.0
    %501 = vmatpush1.msra.mxu0 0.0
    %502 = vmatprep.subr.mxu0 0.0
    %503 = vmatpush1.msra.mxu0 0.0
    %504 = vmatprep.subr.mxu0 0.0
    %505 = vmatpush1.msra.mxu0 0.0
    %506 = vmatprep.subr.mxu0 0.0
    %507 = vmatpush1.msra.mxu0 0.0
    %508 = vmatprep.subr.mxu0 0.0
    %509 = vmatpush1.msra.mxu0 0.0
    %510 = vmatprep.subr.mxu0 0.0
    %511 = vmatpush1.msra.mxu0 0.0
    %512 = vmatprep.subr.mxu0 0.0
    %513 = vmatpush1.msra.mxu0 0.0
    %514 = vmatprep.subr.mxu0 0.0
    %515 = vmatpush1.msra.mxu0 0.0
    %516 = vmatprep.subr.mxu0 0.0
    %517 = vmatpush1.msra.mxu0 0.0
    %518 = vmatprep.subr.mxu0 0.0
    %519 = vmatpush1.msra.mxu0 0.0
    %520 = vmatprep.subr.mxu0 0.0
    %521 = vmatpush1.msra.mxu0 0.0
    %522 = vmatprep.subr.mxu0 0.0
    %523 = vmatpush1.msra.mxu0 0.0
    %524 = vmatprep.subr.mxu0 0.0
    %525 = vmatpush1.msra.mxu0 0.0
    %526 = vmatprep.subr.mxu0 0.0
    %527 = vmatpush1.msra.mxu0 0.0
    %528 = vmatprep.subr.mxu0 0.0
    %529 = vmatpush1.msra.mxu0 0.0
    %530 = vmatprep.subr.mxu0 0.0
    %531 = vmatpush1.msra.mxu0 0.0
    %532 = vmatprep.mubr.f32.mxu0 0.0
    %533 = vmatmul.mubr.f32.gmra.mrb[0].mxu0 %v334
    %v534 = vpop.f32.mrb[0].mxu0
    %v535 = vadd.f32 %v466, %v534
    %v536 = vpop.f32.mrb[0].mxu0
    %537 = vdwg.mxu0
    %v538 = vmax.f32 %v535, 0.0
    %v540 = vlaneseq
    %v541 = vshrl.u32 %v540, 7
    %v542 = vsub.s32 0, %v541
    %v543 = vrot.slane %v368, %v542
    %545 = vmatprep.subr.mxu0 0.0
    %546 = vmatpush1.msra.mxu0 %v352
    %547 = vmatprep.subr.mxu0 0.0
    %548 = vmatpush1.msra.mxu0 %v353
    %549 = vmatprep.subr.mxu0 0.0
    %550 = vmatpush1.msra.mxu0 %v354
    %551 = vmatprep.subr.mxu0 0.0
    %552 = vmatpush1.msra.mxu0 %v355
    %553 = vmatprep.subr.mxu0 0.0
    %554 = vmatpush1.msra.mxu0 %v356
    %555 = vmatprep.subr.mxu0 0.0
    %556 = vmatpush1.msra.mxu0 %v357
    %557 = vmatprep.subr.mxu0 0.0
    %558 = vmatpush1.msra.mxu0 %v358
    %559 = vmatprep.subr.mxu0 0.0
    %560 = vmatpush1.msra.mxu0 %v359
    %561 = vmatprep.subr.mxu0 0.0
    %562 = vmatpush1.msra.mxu0 %v360
    %563 = vmatprep.subr.mxu0 0.0
    %564 = vmatpush1.msra.mxu0 %v361
    %565 = vmatprep.subr.mxu0 0.0
    %566 = vmatpush1.msra.mxu0 %v362
    %567 = vmatprep.subr.mxu0 0.0
    %568 = vmatpush1.msra.mxu0 %v363
    %569 = vmatprep.subr.mxu0 0.0
    %570 = vmatpush1.msra.mxu0 %v364
    %571 = vmatprep.subr.mxu0 0.0
    %572 = vmatpush1.msra.mxu0 %v365
    %573 = vmatprep.subr.mxu0 0.0
    %574 = vmatpush1.msra.mxu0 %v366
    %575 = vmatprep.subr.mxu0 0.0
    %576 = vmatpush1.msra.mxu0 %v367
    %577 = vmatprep.subr.mxu0 0.0
    %578 = vmatpush1.msra.mxu0 0.0
    %579 = vmatprep.subr.mxu0 0.0
    %580 = vmatpush1.msra.mxu0 0.0
    %581 = vmatprep.subr.mxu0 0.0
    %582 = vmatpush1.msra.mxu0 0.0
    %583 = vmatprep.subr.mxu0 0.0
    %584 = vmatpush1.msra.mxu0 0.0
    %585 = vmatprep.subr.mxu0 0.0
    %586 = vmatpush1.msra.mxu0 0.0
    %587 = vmatprep.subr.mxu0 0.0
    %588 = vmatpush1.msra.mxu0 0.0
    %589 = vmatprep.subr.mxu0 0.0
    %590 = vmatpush1.msra.mxu0 0.0
    %591 = vmatprep.subr.mxu0 0.0
    %592 = vmatpush1.msra.mxu0 0.0
    %593 = vmatprep.subr.mxu0 0.0
    %594 = vmatpush1.msra.mxu0 0.0
    %595 = vmatprep.subr.mxu0 0.0
    %596 = vmatpush1.msra.mxu0 0.0
    %597 = vmatprep.subr.mxu0 0.0
    %598 = vmatpush1.msra.mxu0 0.0
    %599 = vmatprep.subr.mxu0 0.0
    %600 = vmatpush1.msra.mxu0 0.0
    %601 = vmatprep.subr.mxu0 0.0
    %602 = vmatpush1.msra.mxu0 0.0
    %603 = vmatprep.subr.mxu0 0.0
    %604 = vmatpush1.msra.mxu0 0.0
    %605 = vmatprep.subr.mxu0 0.0
    %606 = vmatpush1.msra.mxu0 0.0
    %607 = vmatprep.subr.mxu0 0.0
    %608 = vmatpush1.msra.mxu0 0.0
    %609 = vmatprep.mubr.f32.mxu0 0.0
    %610 = vmatmul.mubr.f32.gmra.mrb[0].mxu0 %v538
    %v611 = vpop.f32.mrb[0].mxu0
    %v612 = vadd.f32 %v543, %v611
    %v613 = vpop.f32.mrb[0].mxu0
    %614 = vdwg.mxu0
    %v615 = vadd.f32 %v612, %v459
    %v616 = vmax.f32 %v615, 0.0
    %v617 = vld [vmem:[%s13] sm:$0xff]
    %v618 = vld [vmem:[%s13 + $0x8] sm:$0xff]
    %v619 = vld [vmem:[%s13 + $0x10] sm:$0xff]
    %v620 = vld [vmem:[%s13 + $0x18] sm:$0xff]
    %v621 = vld [vmem:[%s13 + $0x20] sm:$0xff]
    %v622 = vld [vmem:[%s13 + $0x28] sm:$0xff]
    %v623 = vld [vmem:[%s13 + $0x30] sm:$0xff]
    %v624 = vld [vmem:[%s13 + $0x38] sm:$0xff]
    %v625 = vld [vmem:[%s13 + $0x40] sm:$0xff]
    %v626 = vld [vmem:[%s13 + $0x48] sm:$0xff]
    %v627 = vld [vmem:[%s13 + $0x50] sm:$0xff]
    %v628 = vld [vmem:[%s13 + $0x58] sm:$0xff]
    %v629 = vld [vmem:[%s13 + $0x60] sm:$0xff]
    %v630 = vld [vmem:[%s13 + $0x68] sm:$0xff]
    %v631 = vld [vmem:[%s13 + $0x70] sm:$0xff]
    %v632 = vld [vmem:[%s13 + $0x78] sm:$0xff]
    %v633 = vld [vmem:[%s14] sm:$0x1]
    %v635 = vlaneseq
    %v636 = vshrl.u32 %v635, 7
    %v637 = vsub.s32 0, %v636
    %v638 = vrot.slane %v633, %v637
    %640 = vmatprep.subr.mxu0 0.0
    %641 = vmatpush1.msra.mxu0 %v617
    %642 = vmatprep.subr.mxu0 0.0
    %643 = vmatpush1.msra.mxu0 %v618
    %644 = vmatprep.subr.mxu0 0.0
    %645 = vmatpush1.msra.mxu0 %v619
    %646 = vmatprep.subr.mxu0 0.0
    %647 = vmatpush1.msra.mxu0 %v620
    %648 = vmatprep.subr.mxu0 0.0
    %649 = vmatpush1.msra.mxu0 %v621
    %650 = vmatprep.subr.mxu0 0.0
    %651 = vmatpush1.msra.mxu0 %v622
    %652 = vmatprep.subr.mxu0 0.0
    %653 = vmatpush1.msra.mxu0 %v623
    %654 = vmatprep.subr.mxu0 0.0
    %655 = vmatpush1.msra.mxu0 %v624
    %656 = vmatprep.subr.mxu0 0.0
    %657 = vmatpush1.msra.mxu0 %v625
    %658 = vmatprep.subr.mxu0 0.0
    %659 = vmatpush1.msra.mxu0 %v626
    %660 = vmatprep.subr.mxu0 0.0
    %661 = vmatpush1.msra.mxu0 %v627
    %662 = vmatprep.subr.mxu0 0.0
    %663 = vmatpush1.msra.mxu0 %v628
    %664 = vmatprep.subr.mxu0 0.0
    %665 = vmatpush1.msra.mxu0 %v629
    %666 = vmatprep.subr.mxu0 0.0
    %667 = vmatpush1.msra.mxu0 %v630
    %668 = vmatprep.subr.mxu0 0.0
    %669 = vmatpush1.msra.mxu0 %v631
    %670 = vmatprep.subr.mxu0 0.0
    %671 = vmatpush1.msra.mxu0 %v632
    %672 = vmatprep.subr.mxu0 0.0
    %673 = vmatpush1.msra.mxu0 0.0
    %674 = vmatprep.subr.mxu0 0.0
    %675 = vmatpush1.msra.mxu0 0.0
    %676 = vmatprep.subr.mxu0 0.0
    %677 = vmatpush1.msra.mxu0 0.0
    %678 = vmatprep.subr.mxu0 0.0
    %679 = vmatpush1.msra.mxu0 0.0
    %680 = vmatprep.subr.mxu0 0.0
    %681 = vmatpush1.msra.mxu0 0.0
    %682 = vmatprep.subr.mxu0 0.0
    %683 = vmatpush1.msra.mxu0 0.0
    %684 = vmatprep.subr.mxu0 0.0
    %685 = vmatpush1.msra.mxu0 0.0
    %686 = vmatprep.subr.mxu0 0.0
    %687 = vmatpush1.msra.mxu0 0.0
    %688 = vmatprep.subr.mxu0 0.0
    %689 = vmatpush1.msra.mxu0 0.0
    %690 = vmatprep.subr.mxu0 0.0
    %691 = vmatpush1.msra.mxu0 0.0
    %692 = vmatprep.subr.mxu0 0.0
    %693 = vmatpush1.msra.mxu0 0.0
    %694 = vmatprep.subr.mxu0 0.0
    %695 = vmatpush1.msra.mxu0 0.0
    %696 = vmatprep.subr.mxu0 0.0
    %697 = vmatpush1.msra.mxu0 0.0
    %698 = vmatprep.subr.mxu0 0.0
    %699 = vmatpush1.msra.mxu0 0.0
    %700 = vmatprep.subr.mxu0 0.0
    %701 = vmatpush1.msra.mxu0 0.0
    %702 = vmatprep.subr.mxu0 0.0
    %703 = vmatpush1.msra.mxu0 0.0
    %704 = vmatprep.mubr.f32.mxu0 0.0
    %705 = vmatmul.mubr.f32.gmra.mrb[0].mxu0 %v616
    %v706 = vpop.f32.mrb[0].mxu0
    %v707 = vadd.f32 %v638, %v706
    %v708 = vpop.f32.mrb[0].mxu0
    %709 = vdwg.mxu0
    %710 = vst [vmem:[#allocation2] sm:$0xff] %v707
    // Predicated region
    $region62: #{feed_forward_resnet_forward.1} parent=1 // pred_check
      _
    $region63: #{feed_forward_resnet_forward.1} parent=1 // pred_check_branch
      %712 = sbr.rel (0) target = $region65
    $region64: #{feed_forward_resnet_forward.1} parent=1 // pred_region
      %s714 = ssub.s32 128, 128
      %715 = vsyncadd [#allocation3], %s714
      %s717 = sshll.u32 [#allocation2], 4
      %s718 = int_to_ptr.vmem [resolvable:$true] %s717
      %720 = dma.vmem_to_hbm [thread:$0]  %s718, 128, %s15, [#allocation3]
    $region65: #{feed_forward_resnet_forward.1} parent=1 // pred_fallthru
      _
    // Predicated region
    $region66: #{feed_forward_resnet_forward.1} parent=1 // pred_check
      _
    $region67: #{feed_forward_resnet_forward.1} parent=1 // pred_check_branch
      %722 = sbr.rel (0) target = $region69
    $region68: #{feed_forward_resnet_forward.1} parent=1 // pred_region
      %723 = dma.done [#allocation3], 128
    $region69: #{feed_forward_resnet_forward.1} parent=1 // pred_fallthru
      _
    %724 = vsyncpa [#allocation3], 1

</llo_original>
